<compile_context>
chip_gen: v7x
topology: tpu7x:2x2x1
jax: 0.10.0
libtpu: 0.0.40
codegen_flags: <defaults>
</compile_context>

<pallas_src>
import functools

import jax
import jax.numpy as jnp
from jax.experimental import pallas as pl
from jax.experimental.pallas import tpu as pltpu


def _round_up(x, m):
    return ((x + m - 1) // m) * m


# --------------------------------------------------------------------------- #
# Kernel
# --------------------------------------------------------------------------- #
def _affine_sigmoid_kernel(x_ref, w_ref, b_ref, o_ref):
    # x arrives f32 from HBM; bf16 cast here is a cheap VPU pack hidden under DMA.
    h = jnp.dot(x_ref[...].astype(jnp.bfloat16), w_ref[...],
                preferred_element_type=jnp.float32) + b_ref[...]
    # Exact sigmoid (memory-bound kernel -> exact divide is free; output stays in [0,1]).
    o_ref[...] = (1.0 / (1.0 + jnp.exp(-h))).astype(o_ref.dtype)


# --------------------------------------------------------------------------- #
# Wrapper
# --------------------------------------------------------------------------- #
def fold_params(params):
    """Collapse fc1->fc2->fc3 (no inter-layer activation in the module) into one
    affine map. Done once in f32 at HIGHEST precision; exact up to float rounding."""
    hp = jax.lax.Precision.HIGHEST
    W12 = jnp.dot(params["W1"], params["W2"], precision=hp)
    W = jnp.dot(W12, params["W3"], precision=hp)                       # (dim, nc)
    b = (jnp.dot(jnp.dot(params["b1"], params["W2"], precision=hp),
                 params["W3"], precision=hp)
         + jnp.dot(params["b2"], params["W3"], precision=hp)
         + params["b3"])                                               # (nc,)
    return W.astype(jnp.bfloat16), b.astype(jnp.float32)


def _choose_tile_b(B, dim, tile_b):
    """Tile rows: multiple of 256, big enough to amortize per-step overhead,
    >= 2 grid steps when the batch allows (v7x megacore), capped so the
    double-buffered f32 x tile stays well inside v7x's 64 MiB VMEM."""
    n256 = _round_up(max(B, 1), 256) // 256          # batch size in 256-row units
    if n256 >= 2:
        tile_units = min(tile_b // 256, max(1, (n256 + 1) // 2))
    else:
        tile_units = 1
    tile = tile_units * 256
    # Keep 2 * TILE_B * dim * 4 bytes (double-buffered f32 x tile) under ~24 MiB.
    max_rows = max(256, ((12 * 1024 * 1024) // (dim * 4)) // 256 * 256)
    return min(tile, max_rows)


@functools.partial(jax.jit, static_argnames=("tile_b",))
def gp_domain_classifier_forward(x, W, b, *, tile_b=2048):
    """x: (B, dim) float32.  W: (dim, nc) bf16, b: (nc,) f32 from fold_params."""
    B, dim = x.shape
    nc = W.shape[1]

    TILE_B = _choose_tile_b(B, dim, tile_b)
    grid = (pl.cdiv(B, TILE_B),)                     # partial last block is clipped

    b2d = b.reshape(1, nc)

    cost = pl.CostEstimate(
        flops=2 * B * dim * nc,
        transcendentals=B * nc,
        bytes_accessed=B * dim * 4 + B * nc * 4 + dim * nc * 2 + nc * 4,
    )

    return pl.pallas_call(
        _affine_sigmoid_kernel,
        out_shape=jax.ShapeDtypeStruct((B, nc), jnp.float32),
        grid=grid,
        in_specs=[
            # x streams through VMEM in (TILE_B, dim) blocks (double-buffered).
            pl.BlockSpec((TILE_B, dim), lambda i: (i, 0)),
            # Folded weight / bias stay VMEM-resident across the whole grid.
            pl.BlockSpec(W.shape, lambda i: (0, 0)),
            pl.BlockSpec((1, nc), lambda i: (0, 0)),
        ],
        # Narrow, un-padded output: last dim == full array dim (legal even if < 128).
        out_specs=pl.BlockSpec((TILE_B, nc), lambda i: (i, 0)),
        compiler_params=pltpu.CompilerParams(
            dimension_semantics=("parallel",),       # shard batch loop across v7x's 2 TCs
            vmem_limit_bytes=32 * 1024 * 1024,       # fits v5e/v6e/v7x with headroom
        ),
        cost_estimate=cost,
    )(x, W, b2d)


# --------------------------------------------------------------------------- #
# Params / reference (match nn.Linear init shapes of the module)
# --------------------------------------------------------------------------- #
def init_params(key, dim, num_classes):
    k1, k2, k3, k4, k5, k6 = jax.random.split(key, 6)
    s1 = 1.0 / jnp.sqrt(dim)
    s2 = 1.0 / jnp.sqrt(256.0)
    s3 = 1.0 / jnp.sqrt(128.0)
    return {
        "W1": jax.random.uniform(k1, (dim, 256), jnp.float32, -s1, s1),
        "b1": jax.random.uniform(k2, (256,), jnp.float32, -s1, s1),
        "W2": jax.random.uniform(k3, (256, 128), jnp.float32, -s2, s2),
        "b2": jax.random.uniform(k4, (128,), jnp.float32, -s2, s2),
        "W3": jax.random.uniform(k5, (128, num_classes), jnp.float32, -s3, s3),
        "b3": jax.random.uniform(k6, (num_classes,), jnp.float32, -s3, s3),
    }


def _reference(x, params):
    h = x @ params["W1"] + params["b1"]
    h = h @ params["W2"] + params["b2"]
    return jax.nn.sigmoid(h @ params["W3"] + params["b3"])


if __name__ == "__main__":
    DIM, NUM_CLASSES = 64, 8

    key = jax.random.PRNGKey(0)
    kx, kp, kx2 = jax.random.split(key, 3)
    params = init_params(kp, DIM, NUM_CLASSES)
    Wf, bf = fold_params(params)          # fold once (would be cached in real use)

    # --- small-batch path (single partial tile, clipped reads/writes) ---
    B = 8
    x = jax.random.normal(kx, (B, DIM), jnp.float32)
    out = jax.block_until_ready(gp_domain_classifier_forward(x, Wf, bf))
    ref = _reference(x, params)
    assert out.shape == (B, NUM_CLASSES)
    assert bool(jnp.all(out >= 0.0) & jnp.all(out <= 1.0))
    assert jnp.allclose(out, ref, atol=2e-2, rtol=2e-2), \
        float(jnp.max(jnp.abs(out - ref)))

    # --- multi-tile grid path (exercises batch streaming + partial last block) ---
    B2 = 300
    x2 = jax.random.normal(kx2, (B2, DIM), jnp.float32)
    out2 = jax.block_until_ready(gp_domain_classifier_forward(x2, Wf, bf))
    ref2 = _reference(x2, params)
    assert out2.shape == (B2, NUM_CLASSES)
    assert jnp.allclose(out2, ref2, atol=2e-2, rtol=2e-2), \
        float(jnp.max(jnp.abs(out2 - ref2)))

    print("KERNEL_OK")
</pallas_src>

<mosaic_0001>
module attributes {stable_mosaic.version = 11 : i64} {
  func.func @_affine_sigmoid_kernel(%arg0: i32, %arg1: memref<256x64xf32, #tpu.memory_space<vmem>>, %arg2: memref<64x8xbf16, #tpu.memory_space<vmem>>, %arg3: memref<1x8xf32, #tpu.memory_space<vmem>>, %arg4: memref<256x8xf32, #tpu.memory_space<vmem>>) attributes {dimension_semantics = [#tpu.dimension_semantics<parallel>], iteration_bounds = array<i64: 1>, scalar_prefetch = 0 : i64, scratch_operands = 0 : i64, tpu.core_type = #tpu.core_type<tc>, window_params = [{transform_indices = @transform_0, window_bounds = array<i64: 256, 64>}, {pipeline_mode = #tpu.pipeline_mode<synchronous>, transform_indices = @transform_1, window_bounds = array<i64: 64, 8>}, {pipeline_mode = #tpu.pipeline_mode<synchronous>, transform_indices = @transform_2, window_bounds = array<i64: 1, 8>}, {transform_indices = @transform_3, window_bounds = array<i64: 256, 8>}]} {
    %c0 = arith.constant 0 : index
    %c0_0 = arith.constant 0 : index
    %0 = vector.load %arg1[%c0, %c0_0] : memref<256x64xf32, #tpu.memory_space<vmem>>, vector<256x64xf32>
    %1 = arith.truncf %0 : vector<256x64xf32> to vector<256x64xbf16>
    %c0_1 = arith.constant 0 : index
    %c0_2 = arith.constant 0 : index
    %2 = vector.load %arg2[%c0_1, %c0_2] : memref<64x8xbf16, #tpu.memory_space<vmem>>, vector<64x8xbf16>
    %cst = arith.constant dense<0.000000e+00> : vector<256x8xf32>
    %3 = tpu.matmul %1, %2, %cst {dimension_numbers = #tpu.dot_dimension_numbers<[1], [0], [0], [1], [0, 0, 1, 1], [], []>} : vector<256x64xbf16>, vector<64x8xbf16>, vector<256x8xf32> -> vector<256x8xf32>
    %c0_3 = arith.constant 0 : index
    %c0_4 = arith.constant 0 : index
    %4 = vector.load %arg3[%c0_3, %c0_4] : memref<1x8xf32, #tpu.memory_space<vmem>>, vector<1x8xf32>
    %5 = vector.broadcast %4 : vector<1x8xf32> to vector<256x8xf32>
    %6 = arith.addf %3, %5 : vector<256x8xf32>
    %cst_5 = arith.constant 0.000000e+00 : f32
    %7 = vector.broadcast %cst_5 : f32 to vector<256x8xf32>
    %8 = arith.subf %7, %6 : vector<256x8xf32>
    %9 = math.exp %8 : vector<256x8xf32>
    %cst_6 = arith.constant 1.000000e+00 : f32
    %10 = vector.broadcast %cst_6 : f32 to vector<256x8xf32>
    %11 = arith.addf %10, %9 : vector<256x8xf32>
    %cst_7 = arith.constant 1.000000e+00 : f32
    %12 = vector.broadcast %cst_7 : f32 to vector<256x8xf32>
    %13 = arith.divf %12, %11 : vector<256x8xf32>
    %c0_8 = arith.constant 0 : index
    %c0_9 = arith.constant 0 : index
    %14 = vector.load %arg4[%c0_8, %c0_9] : memref<256x8xf32, #tpu.memory_space<vmem>>, vector<256x8xf32>
    tpu.vector_store %arg4[%c0_8, %c0_9], %13 {strides = array<i32>} : memref<256x8xf32, #tpu.memory_space<vmem>>, vector<256x8xf32>,
    return
  }
  func.func @transform_0(%arg0: i32) -> (i32, i32) {
    %c0_i32 = arith.constant 0 : i32
    %c0_i32_0 = arith.constant 0 : i32
    return %arg0, %c0_i32 : i32, i32
  }
  func.func @transform_1(%arg0: i32) -> (i32, i32) {
    %c0_i32 = arith.constant 0 : i32
    %c0_i32_0 = arith.constant 0 : i32
    %c0_i32_1 = arith.constant 0 : i32
    return %c0_i32, %c0_i32_0 : i32, i32
  }
  func.func @transform_2(%arg0: i32) -> (i32, i32) {
    %c0_i32 = arith.constant 0 : i32
    %c0_i32_0 = arith.constant 0 : i32
    %c0_i32_1 = arith.constant 0 : i32
    return %c0_i32, %c0_i32_0 : i32, i32
  }
  func.func @transform_3(%arg0: i32) -> (i32, i32) {
    %c0_i32 = arith.constant 0 : i32
    %c0_i32_0 = arith.constant 0 : i32
    return %arg0, %c0_i32 : i32, i32
  }
}

</mosaic_0001>

<llo_original>
// kernel: gp_domain_classifier_forward.1
$region0: #{gp_domain_classifier_forward.1}
  #allocation0 [shape = 'u32[]', space=smem, size = 0x4, offset = 0x4, fixed_abs, tag = 'smem constant byte address 0x4 - core index']
  #allocation1 [shape = 'u32[144,128]{1,0:T(1,128)}', space=vmem, size = 0x12000, scoped, tag = 'internal scratch']
  %s0 = inlined_call_operand.vmem [shape: f32[8,64], index: 0, kind: input, shape index: {}]
  %s1 = inlined_call_operand.vmem [shape: bf16[64,8], index: 1, kind: input, shape index: {}]
  %s2 = inlined_call_operand.vmem [shape: f32[1,8], index: 2, kind: input, shape index: {}]
  %s3 = inlined_call_operand.hbm [shape: f32[8,8], index: 3, kind: output, shape index: {}]
  %s4 = sld [smem:[#allocation0]]
  $region22: #{gp_domain_classifier_forward.1} parent=0
    _
  %s6 = ssub.s32 1, %s4
  %s7 = scalar_select 0, %s6, %s4
  $region1: #{gp_domain_classifier_forward.1} parent=0
    #allocation2 [shape = 'u8[131072]{0}', space=vmem, size = 0x20000, scoped, tag = 'output window, operand 0, single buffered']
    #allocation3 [shape = 's32[1]{0}', space=sflag, size = 0x4, scoped, tag = 'scoped memory for gp_domain_classifier_forward.1']
    %8 = vsyncpa [#allocation3], 0
    // Predicated region
    $region2: #{gp_domain_classifier_forward.1} parent=1 // pred_check
      _
    $region3: #{gp_domain_classifier_forward.1} parent=1 // pred_check_branch
      %10 = sbr.rel (0) target = $region5
    $region4: #{gp_domain_classifier_forward.1} parent=1 // pred_region
      _
    $region5: #{gp_domain_classifier_forward.1} parent=1 // pred_fallthru
      _
    // Predicated region
    $region6: #{gp_domain_classifier_forward.1} parent=1 // pred_check
      _
    $region7: #{gp_domain_classifier_forward.1} parent=1 // pred_check_branch
      %12 = sbr.rel (0) target = $region9
    $region8: #{gp_domain_classifier_forward.1} parent=1 // pred_region
      _
    $region9: #{gp_domain_classifier_forward.1} parent=1 // pred_fallthru
      _
    // Predicated region
    $region10: #{gp_domain_classifier_forward.1} parent=1 // pred_check
      _
    $region11: #{gp_domain_classifier_forward.1} parent=1 // pred_check_branch
      %14 = sbr.rel (0) target = $region13
    $region12: #{gp_domain_classifier_forward.1} parent=1 // pred_region
      _
    $region13: #{gp_domain_classifier_forward.1} parent=1 // pred_fallthru
      _
    %v16 = vld [vmem:[%s0] sm:$0xff]
    %v17 = vld [vmem:[%s0 + $0x8] sm:$0xff]
    %v18 = vld [vmem:[%s0 + $0x10] sm:$0xff]
    %v19 = vld [vmem:[%s0 + $0x18] sm:$0xff]
    %v20 = vld [vmem:[%s0 + $0x20] sm:$0xff]
    %v21 = vld [vmem:[%s0 + $0x28] sm:$0xff]
    %v22 = vld [vmem:[%s0 + $0x30] sm:$0xff]
    %v23 = vld [vmem:[%s0 + $0x38] sm:$0xff]
    %v24 = vld [vmem:[%s0 + $0x40] sm:$0xff]
    %v25 = vld [vmem:[%s0 + $0x48] sm:$0xff]
    %v26 = vld [vmem:[%s0 + $0x50] sm:$0xff]
    %v27 = vld [vmem:[%s0 + $0x58] sm:$0xff]
    %v28 = vld [vmem:[%s0 + $0x60] sm:$0xff]
    %v29 = vld [vmem:[%s0 + $0x68] sm:$0xff]
    %v30 = vld [vmem:[%s0 + $0x70] sm:$0xff]
    %v31 = vld [vmem:[%s0 + $0x78] sm:$0xff]
    %v32 = vld [vmem:[%s0 + $0x80] sm:$0xff]
    %v33 = vld [vmem:[%s0 + $0x88] sm:$0xff]
    %v34 = vld [vmem:[%s0 + $0x90] sm:$0xff]
    %v35 = vld [vmem:[%s0 + $0x98] sm:$0xff]
    %v36 = vld [vmem:[%s0 + $0xa0] sm:$0xff]
    %v37 = vld [vmem:[%s0 + $0xa8] sm:$0xff]
    %v38 = vld [vmem:[%s0 + $0xb0] sm:$0xff]
    %v39 = vld [vmem:[%s0 + $0xb8] sm:$0xff]
    %v40 = vld [vmem:[%s0 + $0xc0] sm:$0xff]
    %v41 = vld [vmem:[%s0 + $0xc8] sm:$0xff]
    %v42 = vld [vmem:[%s0 + $0xd0] sm:$0xff]
    %v43 = vld [vmem:[%s0 + $0xd8] sm:$0xff]
    %v44 = vld [vmem:[%s0 + $0xe0] sm:$0xff]
    %v45 = vld [vmem:[%s0 + $0xe8] sm:$0xff]
    %v46 = vld [vmem:[%s0 + $0xf0] sm:$0xff]
    %v47 = vld [vmem:[%s0 + $0xf8] sm:$0xff]
    %v48 = vpack.c.bf16 %v17, %v16
    %v49 = vpack.c.bf16 %v19, %v18
    %v50 = vpack.c.bf16 %v21, %v20
    %v51 = vpack.c.bf16 %v23, %v22
    %v52 = vpack.c.bf16 %v25, %v24
    %v53 = vpack.c.bf16 %v27, %v26
    %v54 = vpack.c.bf16 %v29, %v28
    %v55 = vpack.c.bf16 %v31, %v30
    %v56 = vpack.c.bf16 %v33, %v32
    %v57 = vpack.c.bf16 %v35, %v34
    %v58 = vpack.c.bf16 %v37, %v36
    %v59 = vpack.c.bf16 %v39, %v38
    %v60 = vpack.c.bf16 %v41, %v40
    %v61 = vpack.c.bf16 %v43, %v42
    %v62 = vpack.c.bf16 %v45, %v44
    %v63 = vpack.c.bf16 %v47, %v46
    %v64 = vld [vmem:[%s1] sm:$0xf]
    %v65 = vld [vmem:[%s1 + $0x4] sm:$0xf]
    %v66 = vld [vmem:[%s1 + $0x8] sm:$0xf]
    %v67 = vld [vmem:[%s1 + $0xc] sm:$0xf]
    %v68 = vld [vmem:[%s1 + $0x10] sm:$0xf]
    %v69 = vld [vmem:[%s1 + $0x14] sm:$0xf]
    %v70 = vld [vmem:[%s1 + $0x18] sm:$0xf]
    %v71 = vld [vmem:[%s1 + $0x1c] sm:$0xf]
    %v72 = vld [vmem:[%s2] sm:$0x1]
    %v74 = vlaneseq
    %v75 = vshrl.u32 %v74, 7
    %v76 = vsub.s32 0, %v75
    %v77 = vrot.slane %v72, %v76
    %v87 = vunpack.c.l.b16 %v64
    %v88 = vunpack.c.l.b16 %v65
    %v89 = vunpack.c.l.b16 %v66
    %v90 = vunpack.c.l.b16 %v67
    %v91 = vunpack.c.l.b16 %v68
    %v92 = vunpack.c.l.b16 %v69
    %v93 = vunpack.c.l.b16 %v70
    %v94 = vunpack.c.l.b16 %v71
    %v95 = vpack.c.b16 %v88, %v87
    %v96 = vpack.c.b16 %v90, %v89
    %v97 = vpack.c.b16 %v92, %v91
    %v98 = vpack.c.b16 %v94, %v93
    %vm103 = vcmask 523264
    %v105 = vsel %vm103, %v48, 0
    %v108 = vsel %vm103, %v49, 0
    %v111 = vsel %vm103, %v50, 0
    %v114 = vsel %vm103, %v51, 0
    %v117 = vsel %vm103, %v52, 0
    %v120 = vsel %vm103, %v53, 0
    %v123 = vsel %vm103, %v54, 0
    %v126 = vsel %vm103, %v55, 0
    %v129 = vsel %vm103, %v56, 0
    %v132 = vsel %vm103, %v57, 0
    %v135 = vsel %vm103, %v58, 0
    %v138 = vsel %vm103, %v59, 0
    %v141 = vsel %vm103, %v60, 0
    %v144 = vsel %vm103, %v61, 0
    %v147 = vsel %vm103, %v62, 0
    %v150 = vsel %vm103, %v63, 0
    %152 = vmatprep.subr.bf16.mxu0 0
    %153 = vmatpush1.bf16.msra.mxu0 %v95
    %154 = vmatprep.subr.bf16.mxu0 0
    %155 = vmatpush1.bf16.msra.mxu0 %v96
    %156 = vmatprep.subr.bf16.mxu0 0
    %157 = vmatpush1.bf16.msra.mxu0 %v97
    %158 = vmatprep.subr.bf16.mxu0 0
    %159 = vmatpush1.bf16.msra.mxu0 %v98
    %160 = vmatprep.subr.bf16.mxu0 0
    %161 = vmatpush1.bf16.msra.mxu0 0
    %162 = vmatprep.subr.bf16.mxu0 0
    %163 = vmatpush1.bf16.msra.mxu0 0
    %164 = vmatprep.subr.bf16.mxu0 0
    %165 = vmatpush1.bf16.msra.mxu0 0
    %166 = vmatprep.subr.bf16.mxu0 0
    %167 = vmatpush1.bf16.msra.mxu0 0
    %168 = vmatprep.subr.bf16.mxu0 0
    %169 = vmatpush1.bf16.msra.mxu0 0
    %170 = vmatprep.subr.bf16.mxu0 0
    %171 = vmatpush1.bf16.msra.mxu0 0
    %172 = vmatprep.subr.bf16.mxu0 0
    %173 = vmatpush1.bf16.msra.mxu0 0
    %174 = vmatprep.subr.bf16.mxu0 0
    %175 = vmatpush1.bf16.msra.mxu0 0
    %176 = vmatprep.subr.bf16.mxu0 0
    %177 = vmatpush1.bf16.msra.mxu0 0
    %178 = vmatprep.subr.bf16.mxu0 0
    %179 = vmatpush1.bf16.msra.mxu0 0
    %180 = vmatprep.subr.bf16.mxu0 0
    %181 = vmatpush1.bf16.msra.mxu0 0
    %182 = vmatprep.subr.bf16.mxu0 0
    %183 = vmatpush1.bf16.msra.mxu0 0
    %184 = vmatprep.mubr.bf16.mxu0 0
    %185 = vmatmul.mubr.bf16.gmra.mrb[0].mxu0 %v105
    %v186 = vpop.f32.mrb[0].mxu0
    %v187 = vadd.f32 %v77, %v186
    %v188 = vpop.f32.mrb[0].mxu0
    %v189 = vpop.f32.mrb[0].mxu0
    %v190 = vadd.f32 %v77, %v189
    %v191 = vpop.f32.mrb[0].mxu0
    %192 = vmatprep.mubr.bf16.mxu0 0
    %193 = vmatmul.mubr.bf16.gmra.mrb[0].mxu0 %v108
    %v194 = vpop.f32.mrb[0].mxu0
    %v195 = vadd.f32 %v77, %v194
    %v196 = vpop.f32.mrb[0].mxu0
    %v197 = vpop.f32.mrb[0].mxu0
    %v198 = vadd.f32 %v77, %v197
    %v199 = vpop.f32.mrb[0].mxu0
    %200 = vmatprep.mubr.bf16.mxu0 0
    %201 = vmatmul.mubr.bf16.gmra.mrb[0].mxu0 %v111
    %v202 = vpop.f32.mrb[0].mxu0
    %v203 = vadd.f32 %v77, %v202
    %v204 = vpop.f32.mrb[0].mxu0
    %v205 = vpop.f32.mrb[0].mxu0
    %v206 = vadd.f32 %v77, %v205
    %v207 = vpop.f32.mrb[0].mxu0
    %208 = vmatprep.mubr.bf16.mxu0 0
    %209 = vmatmul.mubr.bf16.gmra.mrb[0].mxu0 %v114
    %v210 = vpop.f32.mrb[0].mxu0
    %v211 = vadd.f32 %v77, %v210
    %v212 = vpop.f32.mrb[0].mxu0
    %v213 = vpop.f32.mrb[0].mxu0
    %v214 = vadd.f32 %v77, %v213
    %v215 = vpop.f32.mrb[0].mxu0
    %216 = vmatprep.mubr.bf16.mxu0 0
    %217 = vmatmul.mubr.bf16.gmra.mrb[0].mxu0 %v117
    %v218 = vpop.f32.mrb[0].mxu0
    %v219 = vadd.f32 %v77, %v218
    %v220 = vpop.f32.mrb[0].mxu0
    %v221 = vpop.f32.mrb[0].mxu0
    %v222 = vadd.f32 %v77, %v221
    %v223 = vpop.f32.mrb[0].mxu0
    %224 = vmatprep.mubr.bf16.mxu0 0
    %225 = vmatmul.mubr.bf16.gmra.mrb[0].mxu0 %v120
    %v226 = vpop.f32.mrb[0].mxu0
    %v227 = vadd.f32 %v77, %v226
    %v228 = vpop.f32.mrb[0].mxu0
    %v229 = vpop.f32.mrb[0].mxu0
    %v230 = vadd.f32 %v77, %v229
    %v231 = vpop.f32.mrb[0].mxu0
    %232 = vmatprep.mubr.bf16.mxu0 0
    %233 = vmatmul.mubr.bf16.gmra.mrb[0].mxu0 %v123
    %v234 = vpop.f32.mrb[0].mxu0
    %v235 = vadd.f32 %v77, %v234
    %v236 = vpop.f32.mrb[0].mxu0
    %v237 = vpop.f32.mrb[0].mxu0
    %v238 = vadd.f32 %v77, %v237
    %v239 = vpop.f32.mrb[0].mxu0
    %240 = vmatprep.mubr.bf16.mxu0 0
    %241 = vmatmul.mubr.bf16.gmra.mrb[0].mxu0 %v126
    %v242 = vpop.f32.mrb[0].mxu0
    %v243 = vadd.f32 %v77, %v242
    %v244 = vpop.f32.mrb[0].mxu0
    %v245 = vpop.f32.mrb[0].mxu0
    %v246 = vadd.f32 %v77, %v245
    %v247 = vpop.f32.mrb[0].mxu0
    %248 = vmatprep.mubr.bf16.mxu0 0
    %249 = vmatmul.mubr.bf16.gmra.mrb[0].mxu0 %v129
    %v250 = vpop.f32.mrb[0].mxu0
    %v251 = vadd.f32 %v77, %v250
    %v252 = vpop.f32.mrb[0].mxu0
    %v253 = vpop.f32.mrb[0].mxu0
    %v254 = vadd.f32 %v77, %v253
    %v255 = vpop.f32.mrb[0].mxu0
    %256 = vmatprep.mubr.bf16.mxu0 0
    %257 = vmatmul.mubr.bf16.gmra.mrb[0].mxu0 %v132
    %v258 = vpop.f32.mrb[0].mxu0
    %v259 = vadd.f32 %v77, %v258
    %v260 = vpop.f32.mrb[0].mxu0
    %v261 = vpop.f32.mrb[0].mxu0
    %v262 = vadd.f32 %v77, %v261
    %v263 = vpop.f32.mrb[0].mxu0
    %264 = vmatprep.mubr.bf16.mxu0 0
    %265 = vmatmul.mubr.bf16.gmra.mrb[0].mxu0 %v135
    %v266 = vpop.f32.mrb[0].mxu0
    %v267 = vadd.f32 %v77, %v266
    %v268 = vpop.f32.mrb[0].mxu0
    %v269 = vpop.f32.mrb[0].mxu0
    %v270 = vadd.f32 %v77, %v269
    %v271 = vpop.f32.mrb[0].mxu0
    %272 = vmatprep.mubr.bf16.mxu0 0
    %273 = vmatmul.mubr.bf16.gmra.mrb[0].mxu0 %v138
    %v274 = vpop.f32.mrb[0].mxu0
    %v275 = vadd.f32 %v77, %v274
    %v276 = vpop.f32.mrb[0].mxu0
    %v277 = vpop.f32.mrb[0].mxu0
    %v278 = vadd.f32 %v77, %v277
    %v279 = vpop.f32.mrb[0].mxu0
    %280 = vmatprep.mubr.bf16.mxu0 0
    %281 = vmatmul.mubr.bf16.gmra.mrb[0].mxu0 %v141
    %v282 = vpop.f32.mrb[0].mxu0
    %v283 = vadd.f32 %v77, %v282
    %v284 = vpop.f32.mrb[0].mxu0
    %v285 = vpop.f32.mrb[0].mxu0
    %v286 = vadd.f32 %v77, %v285
    %v287 = vpop.f32.mrb[0].mxu0
    %288 = vmatprep.mubr.bf16.mxu0 0
    %289 = vmatmul.mubr.bf16.gmra.mrb[0].mxu0 %v144
    %v290 = vpop.f32.mrb[0].mxu0
    %v291 = vadd.f32 %v77, %v290
    %v292 = vpop.f32.mrb[0].mxu0
    %v293 = vpop.f32.mrb[0].mxu0
    %v294 = vadd.f32 %v77, %v293
    %v295 = vpop.f32.mrb[0].mxu0
    %296 = vmatprep.mubr.bf16.mxu0 0
    %297 = vmatmul.mubr.bf16.gmra.mrb[0].mxu0 %v147
    %v298 = vpop.f32.mrb[0].mxu0
    %v299 = vadd.f32 %v77, %v298
    %v300 = vpop.f32.mrb[0].mxu0
    %v301 = vpop.f32.mrb[0].mxu0
    %v302 = vadd.f32 %v77, %v301
    %v303 = vpop.f32.mrb[0].mxu0
    %304 = vmatprep.mubr.bf16.mxu0 0
    %305 = vmatmul.mubr.bf16.gmra.mrb[0].mxu0 %v150
    %v306 = vpop.f32.mrb[0].mxu0
    %v307 = vadd.f32 %v77, %v306
    %v308 = vpop.f32.mrb[0].mxu0
    %v309 = vpop.f32.mrb[0].mxu0
    %v310 = vadd.f32 %v77, %v309
    %v311 = vpop.f32.mrb[0].mxu0
    %312 = vdwg.mxu0
    %v313 = vsub.f32 0.0, %v187
    %v314 = vsub.f32 0.0, %v190
    %v315 = vsub.f32 0.0, %v195
    %v316 = vsub.f32 0.0, %v198
    %v317 = vsub.f32 0.0, %v203
    %v318 = vsub.f32 0.0, %v206
    %v319 = vsub.f32 0.0, %v211
    %v320 = vsub.f32 0.0, %v214
    %v321 = vsub.f32 0.0, %v219
    %v322 = vsub.f32 0.0, %v222
    %v323 = vsub.f32 0.0, %v227
    %v324 = vsub.f32 0.0, %v230
    %v325 = vsub.f32 0.0, %v235
    %v326 = vsub.f32 0.0, %v238
    %v327 = vsub.f32 0.0, %v243
    %v328 = vsub.f32 0.0, %v246
    %v329 = vsub.f32 0.0, %v251
    %v330 = vsub.f32 0.0, %v254
    %v331 = vsub.f32 0.0, %v259
    %v332 = vsub.f32 0.0, %v262
    %v333 = vsub.f32 0.0, %v267
    %v334 = vsub.f32 0.0, %v270
    %v335 = vsub.f32 0.0, %v275
    %v336 = vsub.f32 0.0, %v278
    %v337 = vsub.f32 0.0, %v283
    %v338 = vsub.f32 0.0, %v286
    %v339 = vsub.f32 0.0, %v291
    %v340 = vsub.f32 0.0, %v294
    %v341 = vsub.f32 0.0, %v299
    %v342 = vsub.f32 0.0, %v302
    %v343 = vsub.f32 0.0, %v307
    %v344 = vsub.f32 0.0, %v310
    %v345 = vmul.f32 %v313, 1.442695
    %v346 = vpow.pop %v345
    %v347 = vmul.f32 %v314, 1.442695
    %v348 = vpow.pop %v347
    %v349 = vmul.f32 %v315, 1.442695
    %v350 = vpow.pop %v349
    %v351 = vmul.f32 %v316, 1.442695
    %v352 = vpow.pop %v351
    %v353 = vmul.f32 %v317, 1.442695
    %v354 = vpow.pop %v353
    %v355 = vmul.f32 %v318, 1.442695
    %v356 = vpow.pop %v355
    %v357 = vmul.f32 %v319, 1.442695
    %v358 = vpow.pop %v357
    %v359 = vmul.f32 %v320, 1.442695
    %v360 = vpow.pop %v359
    %v361 = vmul.f32 %v321, 1.442695
    %v362 = vpow.pop %v361
    %v363 = vmul.f32 %v322, 1.442695
    %v364 = vpow.pop %v363
    %v365 = vmul.f32 %v323, 1.442695
    %v366 = vpow.pop %v365
    %v367 = vmul.f32 %v324, 1.442695
    %v368 = vpow.pop %v367
    %v369 = vmul.f32 %v325, 1.442695
    %v370 = vpow.pop %v369
    %v371 = vmul.f32 %v326, 1.442695
    %v372 = vpow.pop %v371
    %v373 = vmul.f32 %v327, 1.442695
    %v374 = vpow.pop %v373
    %v375 = vmul.f32 %v328, 1.442695
    %v376 = vpow.pop %v375
    %v377 = vmul.f32 %v329, 1.442695
    %v378 = vpow.pop %v377
    %v379 = vmul.f32 %v330, 1.442695
    %v380 = vpow.pop %v379
    %v381 = vmul.f32 %v331, 1.442695
    %v382 = vpow.pop %v381
    %v383 = vmul.f32 %v332, 1.442695
    %v384 = vpow.pop %v383
    %v385 = vmul.f32 %v333, 1.442695
    %v386 = vpow.pop %v385
    %v387 = vmul.f32 %v334, 1.442695
    %v388 = vpow.pop %v387
    %v389 = vmul.f32 %v335, 1.442695
    %v390 = vpow.pop %v389
    %v391 = vmul.f32 %v336, 1.442695
    %v392 = vpow.pop %v391
    %v393 = vmul.f32 %v337, 1.442695
    %v394 = vpow.pop %v393
    %v395 = vmul.f32 %v338, 1.442695
    %v396 = vpow.pop %v395
    %v397 = vmul.f32 %v339, 1.442695
    %v398 = vpow.pop %v397
    %v399 = vmul.f32 %v340, 1.442695
    %v400 = vpow.pop %v399
    %v401 = vmul.f32 %v341, 1.442695
    %v402 = vpow.pop %v401
    %v403 = vmul.f32 %v342, 1.442695
    %v404 = vpow.pop %v403
    %v405 = vmul.f32 %v343, 1.442695
    %v406 = vpow.pop %v405
    %v407 = vmul.f32 %v344, 1.442695
    %v408 = vpow.pop %v407
    %v409 = vadd.f32 %v346, 1.0
    %v410 = vadd.f32 %v348, 1.0
    %v411 = vadd.f32 %v350, 1.0
    %v412 = vadd.f32 %v352, 1.0
    %v413 = vadd.f32 %v354, 1.0
    %v414 = vadd.f32 %v356, 1.0
    %v415 = vadd.f32 %v358, 1.0
    %v416 = vadd.f32 %v360, 1.0
    %v417 = vadd.f32 %v362, 1.0
    %v418 = vadd.f32 %v364, 1.0
    %v419 = vadd.f32 %v366, 1.0
    %v420 = vadd.f32 %v368, 1.0
    %v421 = vadd.f32 %v370, 1.0
    %v422 = vadd.f32 %v372, 1.0
    %v423 = vadd.f32 %v374, 1.0
    %v424 = vadd.f32 %v376, 1.0
    %v425 = vadd.f32 %v378, 1.0
    %v426 = vadd.f32 %v380, 1.0
    %v427 = vadd.f32 %v382, 1.0
    %v428 = vadd.f32 %v384, 1.0
    %v429 = vadd.f32 %v386, 1.0
    %v430 = vadd.f32 %v388, 1.0
    %v431 = vadd.f32 %v390, 1.0
    %v432 = vadd.f32 %v392, 1.0
    %v433 = vadd.f32 %v394, 1.0
    %v434 = vadd.f32 %v396, 1.0
    %v435 = vadd.f32 %v398, 1.0
    %v436 = vadd.f32 %v400, 1.0
    %v437 = vadd.f32 %v402, 1.0
    %v438 = vadd.f32 %v404, 1.0
    %v439 = vadd.f32 %v406, 1.0
    %v440 = vadd.f32 %v408, 1.0
    %v441 = vrcp.pop %v409
    %v442 = vmul.f32 1.0, %v441
    %v443 = vrcp.pop %v410
    %v444 = vmul.f32 1.0, %v443
    %v445 = vrcp.pop %v411
    %v446 = vmul.f32 1.0, %v445
    %v447 = vrcp.pop %v412
    %v448 = vmul.f32 1.0, %v447
    %v449 = vrcp.pop %v413
    %v450 = vmul.f32 1.0, %v449
    %v451 = vrcp.pop %v414
    %v452 = vmul.f32 1.0, %v451
    %v453 = vrcp.pop %v415
    %v454 = vmul.f32 1.0, %v453
    %v455 = vrcp.pop %v416
    %v456 = vmul.f32 1.0, %v455
    %v457 = vrcp.pop %v417
    %v458 = vmul.f32 1.0, %v457
    %v459 = vrcp.pop %v418
    %v460 = vmul.f32 1.0, %v459
    %v461 = vrcp.pop %v419
    %v462 = vmul.f32 1.0, %v461
    %v463 = vrcp.pop %v420
    %v464 = vmul.f32 1.0, %v463
    %v465 = vrcp.pop %v421
    %v466 = vmul.f32 1.0, %v465
    %v467 = vrcp.pop %v422
    %v468 = vmul.f32 1.0, %v467
    %v469 = vrcp.pop %v423
    %v470 = vmul.f32 1.0, %v469
    %v471 = vrcp.pop %v424
    %v472 = vmul.f32 1.0, %v471
    %v473 = vrcp.pop %v425
    %v474 = vmul.f32 1.0, %v473
    %v475 = vrcp.pop %v426
    %v476 = vmul.f32 1.0, %v475
    %v477 = vrcp.pop %v427
    %v478 = vmul.f32 1.0, %v477
    %v479 = vrcp.pop %v428
    %v480 = vmul.f32 1.0, %v479
    %v481 = vrcp.pop %v429
    %v482 = vmul.f32 1.0, %v481
    %v483 = vrcp.pop %v430
    %v484 = vmul.f32 1.0, %v483
    %v485 = vrcp.pop %v431
    %v486 = vmul.f32 1.0, %v485
    %v487 = vrcp.pop %v432
    %v488 = vmul.f32 1.0, %v487
    %v489 = vrcp.pop %v433
    %v490 = vmul.f32 1.0, %v489
    %v491 = vrcp.pop %v434
    %v492 = vmul.f32 1.0, %v491
    %v493 = vrcp.pop %v435
    %v494 = vmul.f32 1.0, %v493
    %v495 = vrcp.pop %v436
    %v496 = vmul.f32 1.0, %v495
    %v497 = vrcp.pop %v437
    %v498 = vmul.f32 1.0, %v497
    %v499 = vrcp.pop %v438
    %v500 = vmul.f32 1.0, %v499
    %v501 = vrcp.pop %v439
    %v502 = vmul.f32 1.0, %v501
    %v503 = vrcp.pop %v440
    %v504 = vmul.f32 1.0, %v503
    %vm505 = vcmask 64512
    %506 = vst.msk [vmem:[#allocation2] sm:$0xff] %vm505, %v442
    %507 = vst.msk [vmem:[#allocation2 + $0x8] sm:$0xff] %vm505, %v444
    %508 = vst.msk [vmem:[#allocation2 + $0x10] sm:$0xff] %vm505, %v446
    %509 = vst.msk [vmem:[#allocation2 + $0x18] sm:$0xff] %vm505, %v448
    %510 = vst.msk [vmem:[#allocation2 + $0x20] sm:$0xff] %vm505, %v450
    %511 = vst.msk [vmem:[#allocation2 + $0x28] sm:$0xff] %vm505, %v452
    %512 = vst.msk [vmem:[#allocation2 + $0x30] sm:$0xff] %vm505, %v454
    %513 = vst.msk [vmem:[#allocation2 + $0x38] sm:$0xff] %vm505, %v456
    %514 = vst.msk [vmem:[#allocation2 + $0x40] sm:$0xff] %vm505, %v458
    %515 = vst.msk [vmem:[#allocation2 + $0x48] sm:$0xff] %vm505, %v460
    %516 = vst.msk [vmem:[#allocation2 + $0x50] sm:$0xff] %vm505, %v462
    %517 = vst.msk [vmem:[#allocation2 + $0x58] sm:$0xff] %vm505, %v464
    %518 = vst.msk [vmem:[#allocation2 + $0x60] sm:$0xff] %vm505, %v466
    %519 = vst.msk [vmem:[#allocation2 + $0x68] sm:$0xff] %vm505, %v468
    %520 = vst.msk [vmem:[#allocation2 + $0x70] sm:$0xff] %vm505, %v470
    %521 = vst.msk [vmem:[#allocation2 + $0x78] sm:$0xff] %vm505, %v472
    %522 = vst.msk [vmem:[#allocation2 + $0x80] sm:$0xff] %vm505, %v474
    %523 = vst.msk [vmem:[#allocation2 + $0x88] sm:$0xff] %vm505, %v476
    %524 = vst.msk [vmem:[#allocation2 + $0x90] sm:$0xff] %vm505, %v478
    %525 = vst.msk [vmem:[#allocation2 + $0x98] sm:$0xff] %vm505, %v480
    %526 = vst.msk [vmem:[#allocation2 + $0xa0] sm:$0xff] %vm505, %v482
    %527 = vst.msk [vmem:[#allocation2 + $0xa8] sm:$0xff] %vm505, %v484
    %528 = vst.msk [vmem:[#allocation2 + $0xb0] sm:$0xff] %vm505, %v486
    %529 = vst.msk [vmem:[#allocation2 + $0xb8] sm:$0xff] %vm505, %v488
    %530 = vst.msk [vmem:[#allocation2 + $0xc0] sm:$0xff] %vm505, %v490
    %531 = vst.msk [vmem:[#allocation2 + $0xc8] sm:$0xff] %vm505, %v492
    %532 = vst.msk [vmem:[#allocation2 + $0xd0] sm:$0xff] %vm505, %v494
    %533 = vst.msk [vmem:[#allocation2 + $0xd8] sm:$0xff] %vm505, %v496
    %534 = vst.msk [vmem:[#allocation2 + $0xe0] sm:$0xff] %vm505, %v498
    %535 = vst.msk [vmem:[#allocation2 + $0xe8] sm:$0xff] %vm505, %v500
    %536 = vst.msk [vmem:[#allocation2 + $0xf0] sm:$0xff] %vm505, %v502
    %537 = vst.msk [vmem:[#allocation2 + $0xf8] sm:$0xff] %vm505, %v504
    // Predicated region
    $region14: #{gp_domain_classifier_forward.1} parent=1 // pred_check
      _
    $region15: #{gp_domain_classifier_forward.1} parent=1 // pred_check_branch
      %539 = sbr.rel (0) target = $region17
    $region16: #{gp_domain_classifier_forward.1} parent=1 // pred_region
      %s541 = ssub.s32 4096, 128
      %542 = vsyncadd [#allocation3], %s541
      %s543 = sshll.u32 [#allocation2], 4
      %s544 = int_to_ptr.vmem [resolvable:$true] %s543
      %549 = dma.vmem_to_hbm [thread:$0]  %s544, 128, %s3, [#allocation3], 128, 128, 8
    $region17: #{gp_domain_classifier_forward.1} parent=1 // pred_fallthru
      _
    // Predicated region
    $region18: #{gp_domain_classifier_forward.1} parent=1 // pred_check
      _
    $region19: #{gp_domain_classifier_forward.1} parent=1 // pred_check_branch
      %551 = sbr.rel (0) target = $region21
    $region20: #{gp_domain_classifier_forward.1} parent=1 // pred_region
      %552 = dma.done [#allocation3], 4096
    $region21: #{gp_domain_classifier_forward.1} parent=1 // pred_fallthru
      _
    %553 = vsyncpa [#allocation3], 1

</llo_original>
